<compile_context>
chip_gen: v5e
topology: v5e:2x2
jax: 0.10.0
libtpu: 0.0.40
codegen_flags: <defaults>
</compile_context>

<pallas_src>
import functools

import jax
import jax.numpy as jnp
from jax.experimental import pallas as pl
from jax.experimental.pallas import tpu as pltpu

HIDDEN = 64
NUM_HEADS = 4
HEAD_DIM = HIDDEN // NUM_HEADS  # 16


def actor_attn_kernel(drone_ref, fire_ref, w_ref, b_ref, out_ref, *,
                      num_heads, head_dim):
    """Whole (batch-block) per grid step.

    drone_ref: (Bb, Nd, 2)   fire_ref: (Bb, Nf, 2)
    w_ref:     (2, 128)  fused [W_drone->Q (scaled) | W_fire->K]
    b_ref:     (1, 128)  fused [b_Q (scaled) | b_K]
    out_ref:   (Bb, Nd, Nf)
    """
    hidden = num_heads * head_dim
    bb, nd, _ = drone_ref.shape
    _, nf, _ = fire_ref.shape
    nq = bb * nd
    nk = bb * nf

    d = drone_ref[...].reshape(nq, 2)           # (Bb*Nd, 2)
    f = fire_ref[...].reshape(nk, 2)            # (Bb*Nf, 2)

    # Single fused projection: one 128-lane-wide MXU push covers both the
    # drone->Q and fire->K paths (Q rows use lanes 0:64, K rows lanes 64:128;
    # the cross terms are free since the MXU is idle at these sizes).
    x = jnp.concatenate([d, f], axis=0)                         # (Bb*(Nd+Nf), 2)
    y = jnp.dot(x, w_ref[...],
                preferred_element_type=jnp.float32) + b_ref[...]  # (rows, 128)

    # Head-major grouped tensors: (H*Bb, Nd, hd) and (H*Bb, Nf, hd).
    qg = jnp.concatenate(
        [y[0:nq, h * head_dim:(h + 1) * head_dim].reshape(bb, nd, head_dim)
         for h in range(num_heads)], axis=0)
    kg = jnp.concatenate(
        [y[nq:nq + nk,
           hidden + h * head_dim:hidden + (h + 1) * head_dim].reshape(bb, nf, head_dim)
         for h in range(num_heads)], axis=0)

    # One batched score matmul + one vectorized softmax over all (head, batch)
    # groups (Q was pre-scaled by 1/sqrt(head_dim) via the fused weights).
    s = jnp.einsum('gqd,gkd->gqk', qg, kg,
                   preferred_element_type=jnp.float32)           # (H*Bb, Nd, Nf)
    s = s - jnp.max(s, axis=-1, keepdims=True)
    e = jnp.exp(s)
    p = e * pl.reciprocal(jnp.sum(e, axis=-1, keepdims=True), approx=False)

    # Average over heads (head is the major index of the group axis).
    acc = p[0:bb]
    for h in range(1, num_heads):
        acc = acc + p[h * bb:(h + 1) * bb]
    out_ref[...] = acc * (1.0 / num_heads)


def prepare_actor_params(params):
    """One-time param prep (hoisted out of the per-call path).

    Fuses the embedding Linear with the MultiheadAttention Q/K in_proj and
    folds the 1/sqrt(head_dim) softmax scale into the Q side.
    """
    H = HIDDEN
    scale = jnp.float32(1.0 / (HEAD_DIM ** 0.5))
    wq_t = params["in_proj_w"][0:H, :].T            # (H, H)
    wk_t = params["in_proj_w"][H:2 * H, :].T        # (H, H)
    bq = params["in_proj_b"][0:H]
    bk = params["in_proj_b"][H:2 * H]
    # q = (x @ Wde^T + bde) @ Wq^T + bq  ==  x @ (Wde^T @ Wq^T) + (bde @ Wq^T + bq)
    w_dq = (params["w_drone"].T @ wq_t) * scale     # (2, H), scale folded in
    b_dq = (params["b_drone"] @ wq_t + bq) * scale  # (H,)
    w_fk = params["w_fire"].T @ wk_t                # (2, H)
    b_fk = params["b_fire"] @ wk_t + bk             # (H,)
    w_proj = jnp.concatenate([w_dq, w_fk], axis=1)                  # (2, 128)
    b_proj = jnp.concatenate([b_dq, b_fk]).reshape(1, 2 * H)        # (1, 128)
    return {"w_proj": w_proj, "b_proj": b_proj}


def actor_forward(drone_states, fire_states, prepped, *, batch_block=None):
    """Pallas wrapper. Returns attention weights (B, Nd, Nf), like Actor.forward."""
    B, Nd, _ = drone_states.shape
    _, Nf, _ = fire_states.shape
    bb = B if batch_block is None else batch_block
    assert B % bb == 0, "batch_block must divide batch size"

    kernel = functools.partial(actor_attn_kernel,
                               num_heads=NUM_HEADS, head_dim=HEAD_DIM)

    return pl.pallas_call(
        kernel,
        out_shape=jax.ShapeDtypeStruct((B, Nd, Nf), jnp.float32),
        grid=(B // bb,),
        in_specs=[
            pl.BlockSpec((bb, Nd, 2), lambda i: (i, 0, 0)),
            pl.BlockSpec((bb, Nf, 2), lambda i: (i, 0, 0)),
            pl.BlockSpec((2, 2 * HIDDEN), lambda i: (0, 0)),
            pl.BlockSpec((1, 2 * HIDDEN), lambda i: (0, 0)),
        ],
        out_specs=pl.BlockSpec((bb, Nd, Nf), lambda i: (i, 0, 0)),
        compiler_params=pltpu.CompilerParams(
            dimension_semantics=("parallel",)),
    )(drone_states, fire_states, prepped["w_proj"], prepped["b_proj"])


def actor_forward_ref(drone_states, fire_states, params):
    """Pure-JAX reference mirroring PyTorch semantics (unfused weights)."""
    H = HIDDEN
    de = drone_states @ params["w_drone"].T + params["b_drone"]
    fe = fire_states @ params["w_fire"].T + params["b_fire"]
    q = de @ params["in_proj_w"][0:H, :].T + params["in_proj_b"][0:H]
    k = fe @ params["in_proj_w"][H:2 * H, :].T + params["in_proj_b"][H:2 * H]
    B, Nd, _ = q.shape
    Nf = k.shape[1]
    qh = q.reshape(B, Nd, NUM_HEADS, HEAD_DIM).transpose(0, 2, 1, 3)
    kh = k.reshape(B, Nf, NUM_HEADS, HEAD_DIM).transpose(0, 2, 1, 3)
    s = jnp.einsum("bhqd,bhkd->bhqk", qh * (HEAD_DIM ** -0.5), kh)
    p = jax.nn.softmax(s, axis=-1)
    return p.mean(axis=1)  # average over heads (PyTorch default)


def init_params(key):
    ks = jax.random.split(key, 6)
    scale = 0.1
    return {
        "w_drone": scale * jax.random.normal(ks[0], (HIDDEN, 2), jnp.float32),
        "b_drone": scale * jax.random.normal(ks[1], (HIDDEN,), jnp.float32),
        "w_fire": scale * jax.random.normal(ks[2], (HIDDEN, 2), jnp.float32),
        "b_fire": scale * jax.random.normal(ks[3], (HIDDEN,), jnp.float32),
        # Full in_proj (3H, H) as in nn.MultiheadAttention; only Q/K rows used.
        "in_proj_w": scale * jax.random.normal(ks[4], (3 * HIDDEN, HIDDEN), jnp.float32),
        "in_proj_b": scale * jax.random.normal(ks[5], (3 * HIDDEN,), jnp.float32),
    }


if __name__ == "__main__":
    key = jax.random.PRNGKey(0)
    kp, kd, kf = jax.random.split(key, 3)

    B, N_DRONE, N_FIRE = 2, 8, 8
    # states = (drone_states, fire_states), each (B, N, 2) float32
    drone_states = jax.random.normal(kd, (B, N_DRONE, 2), jnp.float32)
    fire_states = jax.random.normal(kf, (B, N_FIRE, 2), jnp.float32)
    params = init_params(kp)

    # One-time weight fusion / transposition (hoisted out of the hot path).
    prepped = prepare_actor_params(params)
    prepped = jax.tree_util.tree_map(jax.block_until_ready, prepped)

    attn_w = actor_forward(drone_states, fire_states, prepped)
    attn_w = jax.block_until_ready(attn_w)

    ref = actor_forward_ref(drone_states, fire_states, params)
    assert attn_w.shape == (B, N_DRONE, N_FIRE)
    assert jnp.allclose(attn_w, ref, atol=1e-5, rtol=1e-5), "mismatch vs reference"
    # Rows of attention weights must sum to 1.
    assert jnp.allclose(attn_w.sum(-1), jnp.ones((B, N_DRONE)), atol=1e-5)

    print("KERNEL_OK")
</pallas_src>

<mosaic_0001>
module attributes {stable_mosaic.version = 11 : i64} {
  func.func @actor_attn_kernel(%arg0: i32, %arg1: memref<2x8x2xf32, #tpu.memory_space<vmem>>, %arg2: memref<2x8x2xf32, #tpu.memory_space<vmem>>, %arg3: memref<2x128xf32, #tpu.memory_space<vmem>>, %arg4: memref<1x128xf32, #tpu.memory_space<vmem>>, %arg5: memref<2x8x8xf32, #tpu.memory_space<vmem>>) attributes {dimension_semantics = [#tpu.dimension_semantics<parallel>], iteration_bounds = array<i64: 1>, scalar_prefetch = 0 : i64, scratch_operands = 0 : i64, tpu.core_type = #tpu.core_type<tc>, window_params = [{transform_indices = @transform_0, window_bounds = array<i64: 2, 8, 2>}, {transform_indices = @transform_1, window_bounds = array<i64: 2, 8, 2>}, {pipeline_mode = #tpu.pipeline_mode<synchronous>, transform_indices = @transform_2, window_bounds = array<i64: 2, 128>}, {pipeline_mode = #tpu.pipeline_mode<synchronous>, transform_indices = @transform_3, window_bounds = array<i64: 1, 128>}, {transform_indices = @transform_4, window_bounds = array<i64: 2, 8, 8>}]} {
    %c0 = arith.constant 0 : index
    %c0_0 = arith.constant 0 : index
    %c0_1 = arith.constant 0 : index
    %0 = vector.load %arg1[%c0, %c0_0, %c0_1] : memref<2x8x2xf32, #tpu.memory_space<vmem>>, vector<2x8x2xf32>
    %1 = vector.shape_cast %0 : vector<2x8x2xf32> to vector<16x2xf32>
    %c0_2 = arith.constant 0 : index
    %c0_3 = arith.constant 0 : index
    %c0_4 = arith.constant 0 : index
    %2 = vector.load %arg2[%c0_2, %c0_3, %c0_4] : memref<2x8x2xf32, #tpu.memory_space<vmem>>, vector<2x8x2xf32>
    %3 = vector.shape_cast %2 : vector<2x8x2xf32> to vector<16x2xf32>
    %4 = tpu.concatenate %1, %3 in 0 : vector<16x2xf32>, vector<16x2xf32> -> vector<32x2xf32>
    %c0_5 = arith.constant 0 : index
    %c0_6 = arith.constant 0 : index
    %5 = vector.load %arg3[%c0_5, %c0_6] : memref<2x128xf32, #tpu.memory_space<vmem>>, vector<2x128xf32>
    %cst = arith.constant dense<0.000000e+00> : vector<32x128xf32>
    %6 = tpu.matmul %4, %5, %cst {dimension_numbers = #tpu.dot_dimension_numbers<[1], [0], [0], [1], [0, 0, 1, 1], [], []>} : vector<32x2xf32>, vector<2x128xf32>, vector<32x128xf32> -> vector<32x128xf32>
    %c0_7 = arith.constant 0 : index
    %c0_8 = arith.constant 0 : index
    %7 = vector.load %arg4[%c0_7, %c0_8] : memref<1x128xf32, #tpu.memory_space<vmem>>, vector<1x128xf32>
    %8 = vector.broadcast %7 : vector<1x128xf32> to vector<32x128xf32>
    %9 = arith.addf %6, %8 : vector<32x128xf32>
    %10 = vector.extract_strided_slice %9 {offsets = [0, 0], sizes = [16, 16], strides = [1, 1]} : vector<32x128xf32> to vector<16x16xf32>
    %11 = vector.shape_cast %10 : vector<16x16xf32> to vector<2x8x16xf32>
    %12 = vector.extract_strided_slice %9 {offsets = [0, 16], sizes = [16, 16], strides = [1, 1]} : vector<32x128xf32> to vector<16x16xf32>
    %13 = vector.shape_cast %12 : vector<16x16xf32> to vector<2x8x16xf32>
    %14 = vector.extract_strided_slice %9 {offsets = [0, 32], sizes = [16, 16], strides = [1, 1]} : vector<32x128xf32> to vector<16x16xf32>
    %15 = vector.shape_cast %14 : vector<16x16xf32> to vector<2x8x16xf32>
    %16 = vector.extract_strided_slice %9 {offsets = [0, 48], sizes = [16, 16], strides = [1, 1]} : vector<32x128xf32> to vector<16x16xf32>
    %17 = vector.shape_cast %16 : vector<16x16xf32> to vector<2x8x16xf32>
    %18 = tpu.concatenate %11, %13, %15, %17 in 0 : vector<2x8x16xf32>, vector<2x8x16xf32>, vector<2x8x16xf32>, vector<2x8x16xf32> -> vector<8x8x16xf32>
    %19 = vector.extract_strided_slice %9 {offsets = [16, 64], sizes = [16, 16], strides = [1, 1]} : vector<32x128xf32> to vector<16x16xf32>
    %20 = vector.shape_cast %19 : vector<16x16xf32> to vector<2x8x16xf32>
    %21 = vector.extract_strided_slice %9 {offsets = [16, 80], sizes = [16, 16], strides = [1, 1]} : vector<32x128xf32> to vector<16x16xf32>
    %22 = vector.shape_cast %21 : vector<16x16xf32> to vector<2x8x16xf32>
    %23 = vector.extract_strided_slice %9 {offsets = [16, 96], sizes = [16, 16], strides = [1, 1]} : vector<32x128xf32> to vector<16x16xf32>
    %24 = vector.shape_cast %23 : vector<16x16xf32> to vector<2x8x16xf32>
    %25 = vector.extract_strided_slice %9 {offsets = [16, 112], sizes = [16, 16], strides = [1, 1]} : vector<32x128xf32> to vector<16x16xf32>
    %26 = vector.shape_cast %25 : vector<16x16xf32> to vector<2x8x16xf32>
    %27 = tpu.concatenate %20, %22, %24, %26 in 0 : vector<2x8x16xf32>, vector<2x8x16xf32>, vector<2x8x16xf32>, vector<2x8x16xf32> -> vector<8x8x16xf32>
    "tpu.trace_start"() <{level = 10 : i32, message = "gqd,gkd->gqk"}> : () -> ()
    %cst_9 = arith.constant dense<0.000000e+00> : vector<8x8x8xf32>
    %28 = tpu.matmul %18, %27, %cst_9 {dimension_numbers = #tpu.dot_dimension_numbers<[2], [2], [1], [1], [0, 0, 0, 1, 1, 1], [0], [0]>} : vector<8x8x16xf32>, vector<8x8x16xf32>, vector<8x8x8xf32> -> vector<8x8x8xf32>
    "tpu.trace_stop"() : () -> ()
    %cst_10 = arith.constant dense<0xFF800000> : vector<8x8xf32>
    %29 = vector.multi_reduction <maximumf>, %28, %cst_10 [2] : vector<8x8x8xf32> to vector<8x8xf32>
    %30 = vector.shape_cast %29 : vector<8x8xf32> to vector<8x8x1xf32>
    %31 = vector.broadcast %30 : vector<8x8x1xf32> to vector<8x8x8xf32>
    %32 = arith.subf %28, %31 : vector<8x8x8xf32>
    %33 = math.exp %32 : vector<8x8x8xf32>
    %cst_11 = arith.constant dense<0.000000e+00> : vector<8x8xf32>
    %34 = vector.multi_reduction <add>, %33, %cst_11 [2] : vector<8x8x8xf32> to vector<8x8xf32>
    %35 = vector.shape_cast %34 : vector<8x8xf32> to vector<8x8x1xf32>
    %36 = tpu.reciprocal %35 : vector<8x8x1xf32> -> vector<8x8x1xf32>
    %37 = vector.broadcast %36 : vector<8x8x1xf32> to vector<8x8x8xf32>
    %38 = arith.mulf %33, %37 : vector<8x8x8xf32>
    %39 = vector.extract_strided_slice %38 {offsets = [0, 0, 0], sizes = [2, 8, 8], strides = [1, 1, 1]} : vector<8x8x8xf32> to vector<2x8x8xf32>
    %40 = vector.extract_strided_slice %38 {offsets = [2, 0, 0], sizes = [2, 8, 8], strides = [1, 1, 1]} : vector<8x8x8xf32> to vector<2x8x8xf32>
    %41 = arith.addf %39, %40 : vector<2x8x8xf32>
    %42 = vector.extract_strided_slice %38 {offsets = [4, 0, 0], sizes = [2, 8, 8], strides = [1, 1, 1]} : vector<8x8x8xf32> to vector<2x8x8xf32>
    %43 = arith.addf %41, %42 : vector<2x8x8xf32>
    %44 = vector.extract_strided_slice %38 {offsets = [6, 0, 0], sizes = [2, 8, 8], strides = [1, 1, 1]} : vector<8x8x8xf32> to vector<2x8x8xf32>
    %45 = arith.addf %43, %44 : vector<2x8x8xf32>
    %cst_12 = arith.constant 2.500000e-01 : f32
    %46 = vector.broadcast %cst_12 : f32 to vector<2x8x8xf32>
    %47 = arith.mulf %45, %46 : vector<2x8x8xf32>
    %c0_13 = arith.constant 0 : index
    %c0_14 = arith.constant 0 : index
    %c0_15 = arith.constant 0 : index
    %48 = vector.load %arg5[%c0_13, %c0_14, %c0_15] : memref<2x8x8xf32, #tpu.memory_space<vmem>>, vector<2x8x8xf32>
    tpu.vector_store %arg5[%c0_13, %c0_14, %c0_15], %47 {strides = array<i32>} : memref<2x8x8xf32, #tpu.memory_space<vmem>>, vector<2x8x8xf32>,
    return
  }
  func.func @transform_0(%arg0: i32) -> (i32, i32, i32) {
    %c0_i32 = arith.constant 0 : i32
    %c0_i32_0 = arith.constant 0 : i32
    %c0_i32_1 = arith.constant 0 : i32
    return %arg0, %c0_i32, %c0_i32_0 : i32, i32, i32
  }
  func.func @transform_1(%arg0: i32) -> (i32, i32, i32) {
    %c0_i32 = arith.constant 0 : i32
    %c0_i32_0 = arith.constant 0 : i32
    %c0_i32_1 = arith.constant 0 : i32
    return %arg0, %c0_i32, %c0_i32_0 : i32, i32, i32
  }
  func.func @transform_2(%arg0: i32) -> (i32, i32) {
    %c0_i32 = arith.constant 0 : i32
    %c0_i32_0 = arith.constant 0 : i32
    %c0_i32_1 = arith.constant 0 : i32
    return %c0_i32, %c0_i32_0 : i32, i32
  }
  func.func @transform_3(%arg0: i32) -> (i32, i32) {
    %c0_i32 = arith.constant 0 : i32
    %c0_i32_0 = arith.constant 0 : i32
    %c0_i32_1 = arith.constant 0 : i32
    return %c0_i32, %c0_i32_0 : i32, i32
  }
  func.func @transform_4(%arg0: i32) -> (i32, i32, i32) {
    %c0_i32 = arith.constant 0 : i32
    %c0_i32_0 = arith.constant 0 : i32
    %c0_i32_1 = arith.constant 0 : i32
    return %arg0, %c0_i32, %c0_i32_0 : i32, i32, i32
  }
}

</mosaic_0001>

<llo_original>
// kernel: tpu_custom_call.1
$region0: #{tpu_custom_call.1}
  #allocation0 [shape = 'u32[]', space=smem, size = 0x4, offset = 0x4, fixed_abs, tag = 'smem constant byte address 0x4 - core index']
  #allocation1 [shape = 'u32[72,128]{1,0:T(1,128)}', space=vmem, size = 0x9000, scoped, tag = 'internal scratch']
  %s0 = inlined_call_operand.vmem [shape: f32[2,8,2], index: 0, kind: input, shape index: {}]
  %s1 = inlined_call_operand.vmem [shape: f32[2,8,2], index: 1, kind: input, shape index: {}]
  %s2 = inlined_call_operand.vmem [shape: f32[2,128], index: 2, kind: input, shape index: {}]
  %s3 = inlined_call_operand.vmem [shape: f32[1,128], index: 3, kind: input, shape index: {}]
  %s4 = inlined_call_operand.hbm [shape: f32[2,8,8], index: 4, kind: output, shape index: {}]
  %s5 = sld [smem:[#allocation0]]
  $region26: #{tpu_custom_call.1} parent=0
    _
  %s7 = ssub.s32 1, %s5
  %s8 = scalar_select 0, %s7, %s5
  $region1: #{tpu_custom_call.1} parent=0
    #allocation2 [shape = 'u8[8192]{0}', space=vmem, size = 0x2000, scoped, tag = 'output window, operand 0, single buffered']
    #allocation3 [shape = 's32[1]{0}', space=sflag, size = 0x4, scoped, tag = 'scoped memory for tpu_custom_call.1']
    %9 = vsyncpa [#allocation3], 0
    // Predicated region
    $region2: #{tpu_custom_call.1} parent=1 // pred_check
      _
    $region3: #{tpu_custom_call.1} parent=1 // pred_check_branch
      %11 = sbr.rel (0) target = $region5
    $region4: #{tpu_custom_call.1} parent=1 // pred_region
      _
    $region5: #{tpu_custom_call.1} parent=1 // pred_fallthru
      _
    // Predicated region
    $region6: #{tpu_custom_call.1} parent=1 // pred_check
      _
    $region7: #{tpu_custom_call.1} parent=1 // pred_check_branch
      %13 = sbr.rel (0) target = $region9
    $region8: #{tpu_custom_call.1} parent=1 // pred_region
      _
    $region9: #{tpu_custom_call.1} parent=1 // pred_fallthru
      _
    // Predicated region
    $region10: #{tpu_custom_call.1} parent=1 // pred_check
      _
    $region11: #{tpu_custom_call.1} parent=1 // pred_check_branch
      %15 = sbr.rel (0) target = $region13
    $region12: #{tpu_custom_call.1} parent=1 // pred_region
      _
    $region13: #{tpu_custom_call.1} parent=1 // pred_fallthru
      _
    // Predicated region
    $region14: #{tpu_custom_call.1} parent=1 // pred_check
      _
    $region15: #{tpu_custom_call.1} parent=1 // pred_check_branch
      %17 = sbr.rel (0) target = $region17
    $region16: #{tpu_custom_call.1} parent=1 // pred_region
      _
    $region17: #{tpu_custom_call.1} parent=1 // pred_fallthru
      _
    %v18 = vld [vmem:[%s0] sm:$0xff]
    %v19 = vld [vmem:[%s0 + $0x8] sm:$0xff]
    %v20 = vld [vmem:[%s1] sm:$0xff]
    %v21 = vld [vmem:[%s1 + $0x8] sm:$0xff]
    %v22 = vld [vmem:[%s2] sm:$0x3]
    %v23 = vld [vmem:[%s3] sm:$0x1]
    %v25 = vperm.slane %v23, 0
    %vm27 = vcmask 15360
    %v29 = vsel %vm27, %v18, 0
    %v32 = vsel %vm27, %v19, 0
    %v35 = vsel %vm27, %v20, 0
    %v38 = vsel %vm27, %v21, 0
    %vm40 = vcmask 1041408
    %v42 = vsel %vm40, %v22, 0
    %44 = vmatpush.msra.mxu0 0.0
    %45 = vmatpush.msra.mxu0 0.0
    %46 = vmatpush.msra.mxu0 0.0
    %47 = vmatpush.msra.mxu0 0.0
    %48 = vmatpush.msra.mxu0 0.0
    %49 = vmatpush.msra.mxu0 0.0
    %50 = vmatpush.msra.mxu0 0.0
    %51 = vmatpush.msra.mxu0 0.0
    %52 = vmatpush.msra.mxu0 0.0
    %53 = vmatpush.msra.mxu0 0.0
    %54 = vmatpush.msra.mxu0 0.0
    %55 = vmatpush.msra.mxu0 0.0
    %56 = vmatpush.msra.mxu0 0.0
    %57 = vmatpush.msra.mxu0 0.0
    %58 = vmatpush.msra.mxu0 0.0
    %59 = vmatpush.msra.mxu0 %v42
    %60 = vmatmul.f32.gmra.mxu0 %v29
    %v61 = vpop.f32.mrf.mxu0
    %v62 = vadd.f32 %v25, %v61
    %63 = vmatmul.f32.gmra.mxu0 %v32
    %v64 = vpop.f32.mrf.mxu0
    %v65 = vadd.f32 %v25, %v64
    %66 = vmatmul.f32.gmra.mxu0 %v35
    %v67 = vpop.f32.mrf.mxu0
    %v68 = vadd.f32 %v25, %v67
    %69 = vmatmul.f32.gmra.mxu0 %v38
    %v70 = vpop.f32.mrf.mxu0
    %v71 = vadd.f32 %v25, %v70
    %72 = vdwg.mxu0
    %75 = vrot.lane.b32.xlu0 %v62, 112
    %v76 = vpop.permute.xlu0 %75
    %77 = vrot.lane.b32.xlu0 %v65, 112
    %v78 = vpop.permute.xlu0 %77
    %79 = vrot.lane.b32.xlu0 %v62, 96
    %v80 = vpop.permute.xlu0 %79
    %81 = vrot.lane.b32.xlu0 %v65, 96
    %v82 = vpop.permute.xlu0 %81
    %83 = vrot.lane.b32.xlu0 %v62, 80
    %v84 = vpop.permute.xlu0 %83
    %85 = vrot.lane.b32.xlu0 %v65, 80
    %v86 = vpop.permute.xlu0 %85
    %89 = vrot.lane.b32.xlu0 %v68, 112
    %v90 = vpop.permute.xlu0 %89
    %91 = vrot.lane.b32.xlu0 %v71, 112
    %v92 = vpop.permute.xlu0 %91
    %93 = vrot.lane.b32.xlu0 %v68, 96
    %v94 = vpop.permute.xlu0 %93
    %95 = vrot.lane.b32.xlu0 %v71, 96
    %v96 = vpop.permute.xlu0 %95
    %97 = vrot.lane.b32.xlu0 %v68, 80
    %v98 = vpop.permute.xlu0 %97
    %99 = vrot.lane.b32.xlu0 %v71, 80
    %v100 = vpop.permute.xlu0 %99
    %101 = vrot.lane.b32.xlu0 %v68, 64
    %v102 = vpop.permute.xlu0 %101
    %vm103 = vcmask 130048
    %v104 = vsel %vm103, %v62, 0
    %v106 = vsel %vm103, %v102, 0
    %108 = vmatpush.xpose.msra.mxu0 0.0
    %109 = vmatpush.xpose.msra.mxu0 0.0
    %110 = vmatpush.xpose.msra.mxu0 0.0
    %111 = vmatpush.xpose.msra.mxu0 0.0
    %112 = vmatpush.xpose.msra.mxu0 0.0
    %113 = vmatpush.xpose.msra.mxu0 0.0
    %114 = vmatpush.xpose.msra.mxu0 0.0
    %115 = vmatpush.xpose.msra.mxu0 0.0
    %116 = vmatpush.xpose.msra.mxu0 0.0
    %117 = vmatpush.xpose.msra.mxu0 0.0
    %118 = vmatpush.xpose.msra.mxu0 0.0
    %119 = vmatpush.xpose.msra.mxu0 0.0
    %120 = vmatpush.xpose.msra.mxu0 0.0
    %121 = vmatpush.xpose.msra.mxu0 0.0
    %122 = vmatpush.xpose.msra.mxu0 0.0
    %123 = vmatpush.xpose.msra.mxu0 %v106
    %124 = vmatmul.f32.gmra.mxu0 %v104
    %v125 = vpop.f32.mrf.mxu0
    %v126 = vadd.f32 0.0, %v125
    %127 = vdwg.mxu0
    %128 = vrot.lane.b32.xlu0 %v71, 64
    %v129 = vpop.permute.xlu0 %128
    %v130 = vsel %vm103, %v65, 0
    %v132 = vsel %vm103, %v129, 0
    %134 = vmatpush.xpose.msra.mxu0 0.0
    %135 = vmatpush.xpose.msra.mxu0 0.0
    %136 = vmatpush.xpose.msra.mxu0 0.0
    %137 = vmatpush.xpose.msra.mxu0 0.0
    %138 = vmatpush.xpose.msra.mxu0 0.0
    %139 = vmatpush.xpose.msra.mxu0 0.0
    %140 = vmatpush.xpose.msra.mxu0 0.0
    %141 = vmatpush.xpose.msra.mxu0 0.0
    %142 = vmatpush.xpose.msra.mxu0 0.0
    %143 = vmatpush.xpose.msra.mxu0 0.0
    %144 = vmatpush.xpose.msra.mxu0 0.0
    %145 = vmatpush.xpose.msra.mxu0 0.0
    %146 = vmatpush.xpose.msra.mxu0 0.0
    %147 = vmatpush.xpose.msra.mxu0 0.0
    %148 = vmatpush.xpose.msra.mxu0 0.0
    %149 = vmatpush.xpose.msra.mxu0 %v132
    %150 = vmatmul.f32.gmra.mxu0 %v130
    %v151 = vpop.f32.mrf.mxu0
    %v152 = vadd.f32 0.0, %v151
    %153 = vdwg.mxu0
    %154 = vrot.lane.b32.xlu0 %v90, 64
    %v155 = vpop.permute.xlu0 %154
    %v156 = vsel %vm103, %v76, 0
    %v158 = vsel %vm103, %v155, 0
    %160 = vmatpush.xpose.msra.mxu0 0.0
    %161 = vmatpush.xpose.msra.mxu0 0.0
    %162 = vmatpush.xpose.msra.mxu0 0.0
    %163 = vmatpush.xpose.msra.mxu0 0.0
    %164 = vmatpush.xpose.msra.mxu0 0.0
    %165 = vmatpush.xpose.msra.mxu0 0.0
    %166 = vmatpush.xpose.msra.mxu0 0.0
    %167 = vmatpush.xpose.msra.mxu0 0.0
    %168 = vmatpush.xpose.msra.mxu0 0.0
    %169 = vmatpush.xpose.msra.mxu0 0.0
    %170 = vmatpush.xpose.msra.mxu0 0.0
    %171 = vmatpush.xpose.msra.mxu0 0.0
    %172 = vmatpush.xpose.msra.mxu0 0.0
    %173 = vmatpush.xpose.msra.mxu0 0.0
    %174 = vmatpush.xpose.msra.mxu0 0.0
    %175 = vmatpush.xpose.msra.mxu0 %v158
    %176 = vmatmul.f32.gmra.mxu0 %v156
    %v177 = vpop.f32.mrf.mxu0
    %v178 = vadd.f32 0.0, %v177
    %179 = vdwg.mxu0
    %180 = vrot.lane.b32.xlu0 %v92, 64
    %v181 = vpop.permute.xlu0 %180
    %v182 = vsel %vm103, %v78, 0
    %v184 = vsel %vm103, %v181, 0
    %186 = vmatpush.xpose.msra.mxu0 0.0
    %187 = vmatpush.xpose.msra.mxu0 0.0
    %188 = vmatpush.xpose.msra.mxu0 0.0
    %189 = vmatpush.xpose.msra.mxu0 0.0
    %190 = vmatpush.xpose.msra.mxu0 0.0
    %191 = vmatpush.xpose.msra.mxu0 0.0
    %192 = vmatpush.xpose.msra.mxu0 0.0
    %193 = vmatpush.xpose.msra.mxu0 0.0
    %194 = vmatpush.xpose.msra.mxu0 0.0
    %195 = vmatpush.xpose.msra.mxu0 0.0
    %196 = vmatpush.xpose.msra.mxu0 0.0
    %197 = vmatpush.xpose.msra.mxu0 0.0
    %198 = vmatpush.xpose.msra.mxu0 0.0
    %199 = vmatpush.xpose.msra.mxu0 0.0
    %200 = vmatpush.xpose.msra.mxu0 0.0
    %201 = vmatpush.xpose.msra.mxu0 %v184
    %202 = vmatmul.f32.gmra.mxu0 %v182
    %v203 = vpop.f32.mrf.mxu0
    %v204 = vadd.f32 0.0, %v203
    %205 = vdwg.mxu0
    %206 = vrot.lane.b32.xlu0 %v94, 64
    %v207 = vpop.permute.xlu0 %206
    %v208 = vsel %vm103, %v80, 0
    %v210 = vsel %vm103, %v207, 0
    %212 = vmatpush.xpose.msra.mxu0 0.0
    %213 = vmatpush.xpose.msra.mxu0 0.0
    %214 = vmatpush.xpose.msra.mxu0 0.0
    %215 = vmatpush.xpose.msra.mxu0 0.0
    %216 = vmatpush.xpose.msra.mxu0 0.0
    %217 = vmatpush.xpose.msra.mxu0 0.0
    %218 = vmatpush.xpose.msra.mxu0 0.0
    %219 = vmatpush.xpose.msra.mxu0 0.0
    %220 = vmatpush.xpose.msra.mxu0 0.0
    %221 = vmatpush.xpose.msra.mxu0 0.0
    %222 = vmatpush.xpose.msra.mxu0 0.0
    %223 = vmatpush.xpose.msra.mxu0 0.0
    %224 = vmatpush.xpose.msra.mxu0 0.0
    %225 = vmatpush.xpose.msra.mxu0 0.0
    %226 = vmatpush.xpose.msra.mxu0 0.0
    %227 = vmatpush.xpose.msra.mxu0 %v210
    %228 = vmatmul.f32.gmra.mxu0 %v208
    %v229 = vpop.f32.mrf.mxu0
    %v230 = vadd.f32 0.0, %v229
    %231 = vdwg.mxu0
    %232 = vrot.lane.b32.xlu0 %v96, 64
    %v233 = vpop.permute.xlu0 %232
    %v234 = vsel %vm103, %v82, 0
    %v236 = vsel %vm103, %v233, 0
    %238 = vmatpush.xpose.msra.mxu0 0.0
    %239 = vmatpush.xpose.msra.mxu0 0.0
    %240 = vmatpush.xpose.msra.mxu0 0.0
    %241 = vmatpush.xpose.msra.mxu0 0.0
    %242 = vmatpush.xpose.msra.mxu0 0.0
    %243 = vmatpush.xpose.msra.mxu0 0.0
    %244 = vmatpush.xpose.msra.mxu0 0.0
    %245 = vmatpush.xpose.msra.mxu0 0.0
    %246 = vmatpush.xpose.msra.mxu0 0.0
    %247 = vmatpush.xpose.msra.mxu0 0.0
    %248 = vmatpush.xpose.msra.mxu0 0.0
    %249 = vmatpush.xpose.msra.mxu0 0.0
    %250 = vmatpush.xpose.msra.mxu0 0.0
    %251 = vmatpush.xpose.msra.mxu0 0.0
    %252 = vmatpush.xpose.msra.mxu0 0.0
    %253 = vmatpush.xpose.msra.mxu0 %v236
    %254 = vmatmul.f32.gmra.mxu0 %v234
    %v255 = vpop.f32.mrf.mxu0
    %v256 = vadd.f32 0.0, %v255
    %257 = vdwg.mxu0
    %258 = vrot.lane.b32.xlu0 %v98, 64
    %v259 = vpop.permute.xlu0 %258
    %v260 = vsel %vm103, %v84, 0
    %v262 = vsel %vm103, %v259, 0
    %264 = vmatpush.xpose.msra.mxu0 0.0
    %265 = vmatpush.xpose.msra.mxu0 0.0
    %266 = vmatpush.xpose.msra.mxu0 0.0
    %267 = vmatpush.xpose.msra.mxu0 0.0
    %268 = vmatpush.xpose.msra.mxu0 0.0
    %269 = vmatpush.xpose.msra.mxu0 0.0
    %270 = vmatpush.xpose.msra.mxu0 0.0
    %271 = vmatpush.xpose.msra.mxu0 0.0
    %272 = vmatpush.xpose.msra.mxu0 0.0
    %273 = vmatpush.xpose.msra.mxu0 0.0
    %274 = vmatpush.xpose.msra.mxu0 0.0
    %275 = vmatpush.xpose.msra.mxu0 0.0
    %276 = vmatpush.xpose.msra.mxu0 0.0
    %277 = vmatpush.xpose.msra.mxu0 0.0
    %278 = vmatpush.xpose.msra.mxu0 0.0
    %279 = vmatpush.xpose.msra.mxu0 %v262
    %280 = vmatmul.f32.gmra.mxu0 %v260
    %v281 = vpop.f32.mrf.mxu0
    %v282 = vadd.f32 0.0, %v281
    %283 = vdwg.mxu0
    %284 = vrot.lane.b32.xlu0 %v100, 64
    %v285 = vpop.permute.xlu0 %284
    %v286 = vsel %vm103, %v86, 0
    %v288 = vsel %vm103, %v285, 0
    %290 = vmatpush.xpose.msra.mxu0 0.0
    %291 = vmatpush.xpose.msra.mxu0 0.0
    %292 = vmatpush.xpose.msra.mxu0 0.0
    %293 = vmatpush.xpose.msra.mxu0 0.0
    %294 = vmatpush.xpose.msra.mxu0 0.0
    %295 = vmatpush.xpose.msra.mxu0 0.0
    %296 = vmatpush.xpose.msra.mxu0 0.0
    %297 = vmatpush.xpose.msra.mxu0 0.0
    %298 = vmatpush.xpose.msra.mxu0 0.0
    %299 = vmatpush.xpose.msra.mxu0 0.0
    %300 = vmatpush.xpose.msra.mxu0 0.0
    %301 = vmatpush.xpose.msra.mxu0 0.0
    %302 = vmatpush.xpose.msra.mxu0 0.0
    %303 = vmatpush.xpose.msra.mxu0 0.0
    %304 = vmatpush.xpose.msra.mxu0 0.0
    %305 = vmatpush.xpose.msra.mxu0 %v288
    %306 = vmatmul.f32.gmra.mxu0 %v286
    %v307 = vpop.f32.mrf.mxu0
    %v308 = vadd.f32 0.0, %v307
    %309 = vdwg.mxu0
    %vm310 = vcmask 64512
    %v311 = vsel %vm310, %v126, -inf
    %312 = vmax.xlane.f32.xlu0 %v311
    %v313 = vpop.xlane.xlu0 %312
    %v314 = vsel %vm310, %v152, -inf
    %315 = vmax.xlane.f32.xlu0 %v314
    %v316 = vpop.xlane.xlu0 %315
    %v317 = vsel %vm310, %v178, -inf
    %318 = vmax.xlane.f32.xlu0 %v317
    %v319 = vpop.xlane.xlu0 %318
    %v320 = vsel %vm310, %v204, -inf
    %321 = vmax.xlane.f32.xlu0 %v320
    %v322 = vpop.xlane.xlu0 %321
    %v323 = vsel %vm310, %v230, -inf
    %324 = vmax.xlane.f32.xlu0 %v323
    %v325 = vpop.xlane.xlu0 %324
    %v326 = vsel %vm310, %v256, -inf
    %327 = vmax.xlane.f32.xlu0 %v326
    %v328 = vpop.xlane.xlu0 %327
    %v329 = vsel %vm310, %v282, -inf
    %330 = vmax.xlane.f32.xlu0 %v329
    %v331 = vpop.xlane.xlu0 %330
    %v332 = vsel %vm310, %v308, -inf
    %333 = vmax.xlane.f32.xlu0 %v332
    %v334 = vpop.xlane.xlu0 %333
    %v335 = vsub.f32 %v126, %v313
    %v336 = vsub.f32 %v152, %v316
    %v337 = vsub.f32 %v178, %v319
    %v338 = vsub.f32 %v204, %v322
    %v339 = vsub.f32 %v230, %v325
    %v340 = vsub.f32 %v256, %v328
    %v341 = vsub.f32 %v282, %v331
    %v342 = vsub.f32 %v308, %v334
    %v343 = vmul.f32 %v335, 1.442695
    %v344 = vpow.pop %v343
    %v345 = vmul.f32 %v336, 1.442695
    %v346 = vpow.pop %v345
    %v347 = vmul.f32 %v337, 1.442695
    %v348 = vpow.pop %v347
    %v349 = vmul.f32 %v338, 1.442695
    %v350 = vpow.pop %v349
    %v351 = vmul.f32 %v339, 1.442695
    %v352 = vpow.pop %v351
    %v353 = vmul.f32 %v340, 1.442695
    %v354 = vpow.pop %v353
    %v355 = vmul.f32 %v341, 1.442695
    %v356 = vpow.pop %v355
    %v357 = vmul.f32 %v342, 1.442695
    %v358 = vpow.pop %v357
    %v359 = vsel %vm310, %v344, 0.0
    %360 = vadd.xlane.f32.xlu0 %v359
    %v361 = vpop.xlane.xlu0 %360
    %v362 = vsel %vm310, %v346, 0.0
    %363 = vadd.xlane.f32.xlu0 %v362
    %v364 = vpop.xlane.xlu0 %363
    %v365 = vsel %vm310, %v348, 0.0
    %366 = vadd.xlane.f32.xlu0 %v365
    %v367 = vpop.xlane.xlu0 %366
    %v368 = vsel %vm310, %v350, 0.0
    %369 = vadd.xlane.f32.xlu0 %v368
    %v370 = vpop.xlane.xlu0 %369
    %v371 = vsel %vm310, %v352, 0.0
    %372 = vadd.xlane.f32.xlu0 %v371
    %v373 = vpop.xlane.xlu0 %372
    %v374 = vsel %vm310, %v354, 0.0
    %375 = vadd.xlane.f32.xlu0 %v374
    %v376 = vpop.xlane.xlu0 %375
    %v377 = vsel %vm310, %v356, 0.0
    %378 = vadd.xlane.f32.xlu0 %v377
    %v379 = vpop.xlane.xlu0 %378
    %v380 = vsel %vm310, %v358, 0.0
    %381 = vadd.xlane.f32.xlu0 %v380
    %v382 = vpop.xlane.xlu0 %381
    %v383 = vrcp.pop %v361
    %v384 = vmul.f32 %v361, %v383
    %v385 = vsub.f32 1.0, %v384
    %v386 = vmul.f32 %v383, %v385
    %v387 = vadd.f32 %v383, %v386
    %vm388 = vweird.f32 %v361
    %vm389 = vweird.f32 %v383
    %vm390 = vmor %vm388, %vm389
    %v391 = vsel %vm390, %v383, %v387
    %v392 = vand.u32 2147483647, %v361
    %vm393 = vcmp.eq.f32.partialorder %v392, 8.507059e+37
    %v394 = vand.u32 %v361, 2147483648
    %v395 = vor.u32 1.1754944e-38, %v394
    %v396 = vsel %vm393, %v395, %v391
    %v397 = vrcp.pop %v364
    %v398 = vmul.f32 %v364, %v397
    %v399 = vsub.f32 1.0, %v398
    %v400 = vmul.f32 %v397, %v399
    %v401 = vadd.f32 %v397, %v400
    %vm402 = vweird.f32 %v364
    %vm403 = vweird.f32 %v397
    %vm404 = vmor %vm402, %vm403
    %v405 = vsel %vm404, %v397, %v401
    %v406 = vand.u32 2147483647, %v364
    %vm407 = vcmp.eq.f32.partialorder %v406, 8.507059e+37
    %v408 = vand.u32 %v364, 2147483648
    %v409 = vor.u32 1.1754944e-38, %v408
    %v410 = vsel %vm407, %v409, %v405
    %v411 = vrcp.pop %v367
    %v412 = vmul.f32 %v367, %v411
    %v413 = vsub.f32 1.0, %v412
    %v414 = vmul.f32 %v411, %v413
    %v415 = vadd.f32 %v411, %v414
    %vm416 = vweird.f32 %v367
    %vm417 = vweird.f32 %v411
    %vm418 = vmor %vm416, %vm417
    %v419 = vsel %vm418, %v411, %v415
    %v420 = vand.u32 2147483647, %v367
    %vm421 = vcmp.eq.f32.partialorder %v420, 8.507059e+37
    %v422 = vand.u32 %v367, 2147483648
    %v423 = vor.u32 1.1754944e-38, %v422
    %v424 = vsel %vm421, %v423, %v419
    %v425 = vrcp.pop %v370
    %v426 = vmul.f32 %v370, %v425
    %v427 = vsub.f32 1.0, %v426
    %v428 = vmul.f32 %v425, %v427
    %v429 = vadd.f32 %v425, %v428
    %vm430 = vweird.f32 %v370
    %vm431 = vweird.f32 %v425
    %vm432 = vmor %vm430, %vm431
    %v433 = vsel %vm432, %v425, %v429
    %v434 = vand.u32 2147483647, %v370
    %vm435 = vcmp.eq.f32.partialorder %v434, 8.507059e+37
    %v436 = vand.u32 %v370, 2147483648
    %v437 = vor.u32 1.1754944e-38, %v436
    %v438 = vsel %vm435, %v437, %v433
    %v439 = vrcp.pop %v373
    %v440 = vmul.f32 %v373, %v439
    %v441 = vsub.f32 1.0, %v440
    %v442 = vmul.f32 %v439, %v441
    %v443 = vadd.f32 %v439, %v442
    %vm444 = vweird.f32 %v373
    %vm445 = vweird.f32 %v439
    %vm446 = vmor %vm444, %vm445
    %v447 = vsel %vm446, %v439, %v443
    %v448 = vand.u32 2147483647, %v373
    %vm449 = vcmp.eq.f32.partialorder %v448, 8.507059e+37
    %v450 = vand.u32 %v373, 2147483648
    %v451 = vor.u32 1.1754944e-38, %v450
    %v452 = vsel %vm449, %v451, %v447
    %v453 = vrcp.pop %v376
    %v454 = vmul.f32 %v376, %v453
    %v455 = vsub.f32 1.0, %v454
    %v456 = vmul.f32 %v453, %v455
    %v457 = vadd.f32 %v453, %v456
    %vm458 = vweird.f32 %v376
    %vm459 = vweird.f32 %v453
    %vm460 = vmor %vm458, %vm459
    %v461 = vsel %vm460, %v453, %v457
    %v462 = vand.u32 2147483647, %v376
    %vm463 = vcmp.eq.f32.partialorder %v462, 8.507059e+37
    %v464 = vand.u32 %v376, 2147483648
    %v465 = vor.u32 1.1754944e-38, %v464
    %v466 = vsel %vm463, %v465, %v461
    %v467 = vrcp.pop %v379
    %v468 = vmul.f32 %v379, %v467
    %v469 = vsub.f32 1.0, %v468
    %v470 = vmul.f32 %v467, %v469
    %v471 = vadd.f32 %v467, %v470
    %vm472 = vweird.f32 %v379
    %vm473 = vweird.f32 %v467
    %vm474 = vmor %vm472, %vm473
    %v475 = vsel %vm474, %v467, %v471
    %v476 = vand.u32 2147483647, %v379
    %vm477 = vcmp.eq.f32.partialorder %v476, 8.507059e+37
    %v478 = vand.u32 %v379, 2147483648
    %v479 = vor.u32 1.1754944e-38, %v478
    %v480 = vsel %vm477, %v479, %v475
    %v481 = vrcp.pop %v382
    %v482 = vmul.f32 %v382, %v481
    %v483 = vsub.f32 1.0, %v482
    %v484 = vmul.f32 %v481, %v483
    %v485 = vadd.f32 %v481, %v484
    %vm486 = vweird.f32 %v382
    %vm487 = vweird.f32 %v481
    %vm488 = vmor %vm486, %vm487
    %v489 = vsel %vm488, %v481, %v485
    %v490 = vand.u32 2147483647, %v382
    %vm491 = vcmp.eq.f32.partialorder %v490, 8.507059e+37
    %v492 = vand.u32 %v382, 2147483648
    %v493 = vor.u32 1.1754944e-38, %v492
    %v494 = vsel %vm491, %v493, %v489
    %v495 = vmul.f32 %v344, %v396
    %v496 = vmul.f32 %v346, %v410
    %v497 = vmul.f32 %v348, %v424
    %v498 = vmul.f32 %v350, %v438
    %v499 = vmul.f32 %v352, %v452
    %v500 = vmul.f32 %v354, %v466
    %v501 = vmul.f32 %v356, %v480
    %v502 = vmul.f32 %v358, %v494
    %v503 = vadd.f32 %v495, %v497
    %v504 = vadd.f32 %v496, %v498
    %v505 = vadd.f32 %v503, %v499
    %v506 = vadd.f32 %v504, %v500
    %v507 = vadd.f32 %v505, %v501
    %v508 = vadd.f32 %v506, %v502
    %v509 = vmul.f32 %v507, 0.25
    %v510 = vmul.f32 %v508, 0.25
    %511 = vst.msk [vmem:[#allocation2] sm:$0xff] %vm310, %v509
    %512 = vst.msk [vmem:[#allocation2 + $0x8] sm:$0xff] %vm310, %v510
    // Predicated region
    $region18: #{tpu_custom_call.1} parent=1 // pred_check
      _
    $region19: #{tpu_custom_call.1} parent=1 // pred_check_branch
      %514 = sbr.rel (0) target = $region21
    $region20: #{tpu_custom_call.1} parent=1 // pred_region
      %516 = vsyncadd [#allocation3], 0
      %s517 = sshll.u32 [#allocation2], 4
      %s518 = int_to_ptr.vmem [resolvable:$true] %s517
      %s519 = sshll.u32 %s4, 4
      %s520 = int_to_ptr.hbm [resolvable:$true] %s519
      %525 = dma.vmem_to_hbm [thread:$0]  %s518, 256, %s520, [#allocation3], 128, 128, 8
    $region21: #{tpu_custom_call.1} parent=1 // pred_fallthru
      _
    // Predicated region
    $region22: #{tpu_custom_call.1} parent=1 // pred_check
      _
    $region23: #{tpu_custom_call.1} parent=1 // pred_check_branch
      %527 = sbr.rel (0) target = $region25
    $region24: #{tpu_custom_call.1} parent=1 // pred_region
      %529 = dma.done [#allocation3], 256
    $region25: #{tpu_custom_call.1} parent=1 // pred_fallthru
      _
    %530 = vsyncpa [#allocation3], 1

</llo_original>
